<compile_context>
chip_gen: v6e
topology: v6e:2x2x1
jax: 0.10.0
libtpu: 0.0.40
codegen_flags: <defaults>
</compile_context>

<pallas_src>
import jax
import jax.numpy as jnp
from jax.experimental import pallas as pl
from jax.experimental.pallas import tpu as pltpu


def _make_inv_s_kernel(start: float, stop: float, inv_total: float):
    """Build the scalar annealer kernel with the schedule baked in as constants."""
    delta = stop - start

    def kernel(it_ref, out_ref):
        # Pure scalar SMEM path: 1 cast, 1 mul, 1 clamp, 1 fma-equivalent.
        it = it_ref[0].astype(jnp.float32)
        frac = jnp.minimum(jnp.maximum(it * inv_total, 0.0), 1.0)
        out_ref[0] = start + delta * frac

    return kernel


def build_var_single_manual_forward(start_val: float, stop_val: float, anneal_iters: int):
    """Returns a jitted callable: int32[1] iteration -> float32[1] inv_s."""
    total = max(int(anneal_iters), 1)  # guard zero-length schedule (NaN otherwise)
    kernel = _make_inv_s_kernel(float(start_val), float(stop_val), 1.0 / float(total))

    call = pl.pallas_call(
        kernel,
        out_shape=jax.ShapeDtypeStruct((1,), jnp.float32),
        in_specs=[pl.BlockSpec(memory_space=pltpu.MemorySpace.SMEM)],
        out_specs=pl.BlockSpec(memory_space=pltpu.MemorySpace.SMEM),
    )
    # Jit once: repeated forward() calls hit the executable cache instead of
    # re-dispatching an eager pallas_call every training step.
    return jax.jit(call)


class VarSingleManualPallas:
    """JAX/Pallas equivalent of VarSingleManual with a linear inv_s annealer."""

    def __init__(self, start_val: float, stop_val: float, anneal_iters: int):
        # Deterministic schedule config (stands in for inv_s_anneal_cfg); no weights.
        self._forward = build_var_single_manual_forward(start_val, stop_val, anneal_iters)
        # Device-resident iteration counter (avoids a fresh array per forward()).
        self._it_host = 0
        self._it = jnp.zeros((1,), dtype=jnp.int32)

    def set_iter(self, it: int):
        it = int(it)
        if it != self._it_host:
            self._it_host = it
            self._it = jnp.asarray([it], dtype=jnp.int32)

    def forward(self, it: int = None) -> jnp.ndarray:
        if it is not None:
            self.set_iter(it)
        # Returns a float32[1] device array; take float(out[0]) if a Python
        # float is needed (that forces a device sync, so defer when possible).
        return self._forward(self._it)


if __name__ == "__main__":
    # Deterministic example input (PRNGKey used only to pick an iteration).
    key = jax.random.PRNGKey(0)
    it_example = int(jax.random.randint(key, (), 0, 1000))

    # Typical NeuS-style inv_s schedule: 20 -> 100 over 1000 iterations.
    module = VarSingleManualPallas(start_val=20.0, stop_val=100.0, anneal_iters=1000)

    out = module.forward(it=it_example)
    out = jax.block_until_ready(out)

    # Reference check in plain Python.
    frac = min(max(it_example / 1000.0, 0.0), 1.0)
    ref = 20.0 + (100.0 - 20.0) * frac
    assert abs(float(out[0]) - ref) < 1e-4, (float(out[0]), ref)

    # Exercise the cached executable with a second iteration (no retrace),
    # including the clamp branch past the end of the schedule.
    out2 = jax.block_until_ready(module.forward(it=2 * it_example + 1500))
    frac2 = min(max((2 * it_example + 1500) / 1000.0, 0.0), 1.0)
    ref2 = 20.0 + (100.0 - 20.0) * frac2
    assert abs(float(out2[0]) - ref2) < 1e-4, (float(out2[0]), ref2)

    print("KERNEL_OK")
</pallas_src>

<mosaic_0001>
module attributes {stable_mosaic.version = 11 : i64} {
  func.func @kernel(%arg0: memref<1xi32, #tpu.memory_space<smem>>, %arg1: memref<1xf32, #tpu.memory_space<smem>>) attributes {dimension_semantics = [], scalar_prefetch = 0 : i64, scratch_operands = 0 : i64, tpu.core_type = #tpu.core_type<tc>} {
    %c0 = arith.constant 0 : index
    %0 = memref.load %arg0[%c0] : memref<1xi32, #tpu.memory_space<smem>>
    %1 = arith.sitofp %0 : i32 to f32
    %cst = arith.constant 1.000000e-03 : f32
    %2 = arith.mulf %1, %cst : f32
    %cst_0 = arith.constant 0.000000e+00 : f32
    %3 = arith.maximumf %2, %cst_0 : f32
    %cst_1 = arith.constant 1.000000e+00 : f32
    %4 = arith.minimumf %3, %cst_1 : f32
    %cst_2 = arith.constant 8.000000e+01 : f32
    %5 = arith.mulf %cst_2, %4 : f32
    %cst_3 = arith.constant 2.000000e+01 : f32
    %6 = arith.addf %cst_3, %5 : f32
    %c0_4 = arith.constant 0 : index
    %7 = memref.load %arg1[%c0_4] : memref<1xf32, #tpu.memory_space<smem>>
    memref.store %6, %arg1[%c0_4] : memref<1xf32, #tpu.memory_space<smem>>
    return
  }
}

</mosaic_0001>

<llo_original>
// kernel: tpu_custom_call.1
$region0: #{tpu_custom_call.1}
  #allocation0 [shape = 'u32[]', space=smem, size = 0x4, offset = 0x4, fixed_abs, tag = 'smem constant byte address 0x4 - core index']
  #allocation1 [shape = 'u32[144,128]{1,0:T(1,128)}', space=vmem, size = 0x12000, scoped, tag = 'internal scratch']
  #allocation2 [shape = 's32[1]{0:T(128)S(6)}', space=smem, size = 0x200, scoped, tag = 'scoped memory for tpu_custom_call.1']
  %s0 = inlined_call_operand.<no memory space> [shape: s32[1], index: 0, kind: input, shape index: {}]
  %s1 = inlined_call_operand.hbm [shape: f32[1], index: 1, kind: output, shape index: {}]
  %s2 = sld [smem:[#allocation0]]
  $region14: #{tpu_custom_call.1} parent=0
    _
  %s4 = ssub.s32 1, %s2
  %s5 = scalar_select 0, %s4, %s2
  %6 = sst [smem:[#allocation2]] %s0
  $region1: #{tpu_custom_call.1} parent=0
    #allocation3 [shape = 'u8[512]{0}', space=smem, size = 0x200, scoped, tag = 'output window, operand 0, single buffered']
    #allocation4 [shape = 's32[1]{0}', space=sflag, size = 0x4, scoped, tag = 'scoped memory for tpu_custom_call.1']
    %7 = vsyncpa [#allocation4], 0
    // Predicated region
    $region2: #{tpu_custom_call.1} parent=1 // pred_check
      _
    $region3: #{tpu_custom_call.1} parent=1 // pred_check_branch
      %9 = sbr.rel (0) target = $region5
    $region4: #{tpu_custom_call.1} parent=1 // pred_region
      _
    $region5: #{tpu_custom_call.1} parent=1 // pred_fallthru
      _
    %s10 = sld [smem:[#allocation2]]
    %s11 = scvt.s32.f32 %s10
    %s12 = smul.f32 %s11, 0.001
    %s13 = smax.f32 %s12, 0.0
    %s14 = smin.f32 %s13, 1.0
    %s15 = smul.f32 %s14, 80.0
    %s16 = sadd.f32 %s15, 20.0
    %s17 = scalar_lea.smem [#allocation3], 0
    %18 = sst [smem:[%s17]] %s16
    // Predicated region
    $region6: #{tpu_custom_call.1} parent=1 // pred_check
      _
    $region7: #{tpu_custom_call.1} parent=1 // pred_check_branch
      %20 = sbr.rel (0) target = $region9
    $region8: #{tpu_custom_call.1} parent=1 // pred_region
      %s22 = ssub.s32 16, 16
      %23 = vsyncadd [#allocation4], %s22
      %26 = dma.smem_to_hbm [#allocation3], 16, %s1, [#allocation4]
    $region9: #{tpu_custom_call.1} parent=1 // pred_fallthru
      _
    // Predicated region
    $region10: #{tpu_custom_call.1} parent=1 // pred_check
      _
    $region11: #{tpu_custom_call.1} parent=1 // pred_check_branch
      %28 = sbr.rel (0) target = $region13
    $region12: #{tpu_custom_call.1} parent=1 // pred_region
      %29 = dma.done [#allocation4], 16
    $region13: #{tpu_custom_call.1} parent=1 // pred_fallthru
      _
    %30 = sfence
    %31 = vsyncpa [#allocation4], 1

</llo_original>
